<compile_context>
chip_gen: v6e
topology: v6e:2x2x1
jax: 0.10.0
libtpu: 0.0.40
codegen_flags: <defaults>
</compile_context>

<pallas_src>
import functools

import numpy as np
import jax
import jax.numpy as jnp
from jax.experimental import pallas as pl
from jax.experimental.pallas import tpu as pltpu


# Front/tail zero pad (in lanes) around each stream's flattened padded image
# so every one of the 9 tap slices has a non-negative static start offset and
# per-stream regions stay 128-lane aligned.  Requires W + 3 <= FRONT.
FRONT = 128


def _round_up(x, m):
    return ((x + m - 1) // m) * m


# ----------------------------------------------------------------------------
# Geometry / host-side layout helpers
# ----------------------------------------------------------------------------
def _geometry(H, W):
    """Flattened, zero-padded spatial layout shared by every activation."""
    Hp, Wp = H + 2, W + 2
    q = Hp * Wp                                   # padded image, flattened
    p_cmp = _round_up(q, 128)                     # lane-aligned compute width
    p_buf = FRONT + p_cmp + FRONT                 # front zeros | data | tail zeros
    assert Wp + 1 <= FRONT, "image too wide for single-block tap slicing"
    # tap (kh, kw) reads input at padded coord (j + kh*Wp + kw - (Wp+1)).
    tap_starts = tuple(FRONT - (Wp + 1) + kh * Wp + kw
                       for kh in range(3) for kw in range(3))
    js = np.arange(p_cmp)
    row, col = js // Wp, js % Wp
    valid = (js < q) & (row >= 1) & (row <= H) & (col >= 1) & (col <= W)
    mask = valid.astype(np.float32)               # (p_cmp,), 1 on real pixels
    return Hp, Wp, q, p_cmp, p_buf, tap_starts, mask


def _to_padded_flat(img_nchw, p_buf, cin_pad):
    """NCHW images -> (cin_pad, N*p_buf) bf16: per-stream padded-flat chunks
    concatenated along the lane axis (streams folded into lanes)."""
    n, c, h, w = img_nchw.shape
    xp = jnp.pad(img_nchw.astype(jnp.float32),
                 ((0, 0), (0, cin_pad - c), (1, 1), (1, 1)))
    flat = xp.reshape(n, cin_pad, (h + 2) * (w + 2))
    flat = jnp.pad(flat, ((0, 0), (0, 0), (FRONT, p_buf - FRONT - flat.shape[-1])))
    return jnp.transpose(flat, (1, 0, 2)).reshape(cin_pad, n * p_buf) \
              .astype(jnp.bfloat16)


def _prep_w(w, cin_pad):
    """Conv2d weight (Cout, Cin, 3, 3) -> packed (Cout, 9*cin_pad) bf16, with
    columns ordered tap-major then in-channel (matches the tap stack)."""
    cout, cin = w.shape[0], w.shape[1]
    wt = jnp.transpose(w.astype(jnp.float32), (2, 3, 0, 1)).reshape(9, cout, cin)
    wt = jnp.pad(wt, ((0, 0), (0, 0), (0, cin_pad - cin)))   # (9, cout, cin_pad)
    return jnp.transpose(wt, (1, 0, 2)).reshape(cout, 9 * cin_pad) \
              .astype(jnp.bfloat16)


def _prep_b(b):
    return b.reshape(-1, 1).astype(jnp.float32)   # (Cout, 1), lane broadcast


# ----------------------------------------------------------------------------
# Pallas kernels
# ----------------------------------------------------------------------------
def _conv1_target_kernel(x_ref, w1_ref, b1_ref, mask_ref, o_ref, xstack_ref,
                         *, tap_starts, p_cmp, cin_pad):
    """conv_1 of the content image (the ContentLoss target), masked flat layout.
    Single K=9*Cin matmul over the sublane-stacked tap operand."""
    for t, s in enumerate(tap_starts):
        xstack_ref[pl.ds(t * cin_pad, cin_pad), :] = x_ref[:, pl.ds(s, p_cmp)]
    y = jnp.dot(w1_ref[...], xstack_ref[...],
                preferred_element_type=jnp.float32) + b1_ref[...]
    o_ref[...] = y * mask_ref[...]


def _fused_forward_kernel(x_ref, w1_ref, b1_ref, w2_ref, b2_ref, ct_ref, mask_ref,
                          y2x_ref, closs_ref, sloss_ref,
                          xstack_ref, a1stack_ref, a1p_ref,
                          *, tap_starts, p_cmp, p_buf, lanes, front,
                          c1, c2, cin_pad, hw, b_style, cw, sw):
    """Single invocation: conv_1 -> content tap -> relu -> conv_2 -> Grams ->
    style tap, with all streams (x + style targets) folded along lanes."""
    mask = mask_ref[...]                          # (1, lanes) in {0, 1}

    # ---- conv_1: stack 9 shifted tap slices along sublanes, one K=9*Cin dot --
    for t, s in enumerate(tap_starts):
        xstack_ref[pl.ds(t * cin_pad, cin_pad), :] = x_ref[:, pl.ds(s, lanes)]
    y1 = jnp.dot(w1_ref[...], xstack_ref[...],
                 preferred_element_type=jnp.float32) + b1_ref[...]
    y1m = y1 * mask                               # mask applied once, reused

    # ---- content_loss_1 (stream 0 = first p_cmp lanes): MSE(cw*x1, cw*ct) ----
    d = y1m[:, :p_cmp] - ct_ref[...]              # ct is already masked
    closs_ref[0, 0] = jnp.sum(d * d) * (cw * cw / (c1 * hw))

    # ---- relu_1 -> zero-padded conv_2 input (only pad strips get zeroed) -----
    a1p_ref[:, pl.ds(0, front)] = jnp.zeros((c1, front), a1p_ref.dtype)
    a1p_ref[:, pl.ds(front + lanes, front)] = jnp.zeros((c1, front), a1p_ref.dtype)
    a1p_ref[:, pl.ds(front, lanes)] = jnp.maximum(y1m, 0.0).astype(a1p_ref.dtype)

    # ---- conv_2 ---------------------------------------------------------------
    for t, s in enumerate(tap_starts):
        a1stack_ref[pl.ds(t * c1, c1), :] = a1p_ref[:, pl.ds(s, lanes)]
    y2 = jnp.dot(w2_ref[...], a1stack_ref[...],
                 preferred_element_type=jnp.float32) + b2_ref[...]
    y2m = y2 * mask
    y2x_ref[...] = y2m[:, :p_cmp]                 # stream-0 features only

    # ---- style_loss_2: per-stream Gram (bf16 operands, f32 accumulation) -----
    y2b = y2m.astype(jnp.bfloat16)
    inv = 1.0 / (c2 * hw)                         # GramMatrix: / (b*c*d)
    g0 = None
    acc = jnp.float32(0.0)
    for s in range(1 + b_style):
        ys = y2b[:, s * p_buf:s * p_buf + p_cmp]  # 128-aligned static slice
        g = jax.lax.dot_general(ys, ys, (((1,), (1,)), ((), ())),
                                preferred_element_type=jnp.float32) * inv
        if s == 0:
            g0 = g                                # G_input
        else:
            dg = g0 - g
            acc = acc + jnp.sum(dg * dg)
    sloss_ref[0, 0] = acc * (sw * sw / (b_style * c2 * c2))


# ----------------------------------------------------------------------------
# StyleTransferModel: compile() + forward()
# ----------------------------------------------------------------------------
def compile_content_target(content_img_nhwc, params):
    """Mirrors StyleTransferModel.compile(): NHWC 0..255 image -> NCHW/255 ->
    conv_1 activation (the ContentLoss target), in the kernel's flat layout."""
    c = jnp.transpose(content_img_nhwc, (0, 3, 1, 2)).astype(jnp.float32) / 255.0
    _, cin, h, w = c.shape
    cin_pad = _round_up(cin, 8)
    c1 = params["w1"].shape[0]
    _, _, _, p_cmp, p_buf, tap_starts, mask_np = _geometry(h, w)
    kern = functools.partial(_conv1_target_kernel, tap_starts=tap_starts,
                             p_cmp=p_cmp, cin_pad=cin_pad)
    return pl.pallas_call(
        kern,
        out_shape=jax.ShapeDtypeStruct((c1, p_cmp), jnp.float32),
        in_specs=[pl.BlockSpec(memory_space=pltpu.MemorySpace.VMEM)] * 4,
        out_specs=pl.BlockSpec(memory_space=pltpu.MemorySpace.VMEM),
        scratch_shapes=[pltpu.VMEM((9 * cin_pad, p_cmp), jnp.bfloat16)],
    )(_to_padded_flat(c, p_buf, cin_pad), _prep_w(params["w1"], cin_pad),
      _prep_b(params["b1"]), jnp.asarray(mask_np[None, :]))


def style_transfer_forward(x, targets, params, content_target,
                           content_weight, style_weight):
    """Forward over conv_1 -> content_loss_1 -> relu_1 -> conv_2 -> style_loss_2.
    Returns (content_loss, style_loss, conv_2 features of x); the torch forward
    stashes these on the loss modules instead of returning them."""
    b_style = targets.shape[0]
    n_streams = 1 + b_style
    _, cin, h, w = x.shape
    cin_pad = _round_up(cin, 8)
    c1, c2 = params["w1"].shape[0], params["w2"].shape[0]
    hp, wp, q, p_cmp, p_buf, tap_starts, mask_np = _geometry(h, w)
    lanes = (n_streams - 1) * p_buf + p_cmp       # active lanes (all streams)

    imgs = jnp.concatenate([x, targets], axis=0)          # (N, 3, H, W)
    imgs_flat = _to_padded_flat(imgs, p_buf, cin_pad)     # (cin_pad, N*p_buf)

    mask_big = np.zeros((1, lanes), np.float32)
    for s in range(n_streams):
        mask_big[0, s * p_buf:s * p_buf + p_cmp] = mask_np

    kern = functools.partial(
        _fused_forward_kernel, tap_starts=tap_starts, p_cmp=p_cmp, p_buf=p_buf,
        lanes=lanes, front=FRONT, c1=c1, c2=c2, cin_pad=cin_pad, hw=h * w,
        b_style=b_style, cw=float(content_weight), sw=float(style_weight))

    y2x_flat, closs, sloss = pl.pallas_call(
        kern,
        out_shape=(jax.ShapeDtypeStruct((c2, p_cmp), jnp.float32),
                   jax.ShapeDtypeStruct((1, 1), jnp.float32),
                   jax.ShapeDtypeStruct((1, 1), jnp.float32)),
        in_specs=[pl.BlockSpec(memory_space=pltpu.MemorySpace.VMEM)] * 7,
        out_specs=(pl.BlockSpec(memory_space=pltpu.MemorySpace.VMEM),
                   pl.BlockSpec(memory_space=pltpu.MemorySpace.SMEM),
                   pl.BlockSpec(memory_space=pltpu.MemorySpace.SMEM)),
        scratch_shapes=[
            pltpu.VMEM((9 * cin_pad, lanes), jnp.bfloat16),       # conv_1 tap stack
            pltpu.VMEM((9 * c1, lanes), jnp.bfloat16),            # conv_2 tap stack
            pltpu.VMEM((c1, n_streams * p_buf), jnp.bfloat16),    # padded relu(conv_1)
        ],
    )(imgs_flat, _prep_w(params["w1"], cin_pad), _prep_b(params["b1"]),
      _prep_w(params["w2"], c1), _prep_b(params["b2"]),
      content_target, jnp.asarray(mask_big))

    # Unpack the flat padded layout back to NCHW (stream 0 = the image x).
    x2 = y2x_flat[:, :q].reshape(1, c2, hp, wp)[:, :, 1:h + 1, 1:w + 1]
    return closs[0, 0], sloss[0, 0], x2


# ----------------------------------------------------------------------------
# Pure-JAX reference (correctness check only).  Mirrors the kernel's dtype
# policy: conv / Gram operands rounded to bf16, f32 accumulation, losses f32.
# ----------------------------------------------------------------------------
def _q(v):
    return v.astype(jnp.bfloat16).astype(jnp.float32)


def _ref_conv(z, w, b):
    out = jax.lax.conv_general_dilated(
        _q(z), _q(w), window_strides=(1, 1), padding="SAME",
        dimension_numbers=("NCHW", "OIHW", "NCHW"),
        precision=jax.lax.Precision.HIGHEST)
    return out + b.astype(jnp.float32)[None, :, None, None]


def _ref_gram(z):
    n, c, h, w = z.shape
    f = _q(z).reshape(n, c, h * w)
    return jnp.einsum("nij,nkj->nik", f, f,
                      precision=jax.lax.Precision.HIGHEST) / (c * h * w)


def _ref_forward(x, targets, params, content_img_nhwc, cw, sw):
    c = jnp.transpose(content_img_nhwc, (0, 3, 1, 2)).astype(jnp.float32) / 255.0
    ct = _ref_conv(c, params["w1"], params["b1"])
    x1 = _ref_conv(x, params["w1"], params["b1"])
    t1 = _ref_conv(targets, params["w1"], params["b1"])
    # ContentLoss: target pre-scaled by weight, input scaled in forward -> w^2.
    closs = jnp.mean((x1 * cw - ct * cw) ** 2)
    x2 = _ref_conv(jnp.maximum(x1, 0.0), params["w2"], params["b2"])
    t2 = _ref_conv(jnp.maximum(t1, 0.0), params["w2"], params["b2"])
    g_x = _ref_gram(x2) * sw
    g_t = _ref_gram(t2) * sw
    sloss = jnp.mean((jnp.broadcast_to(g_x, g_t.shape) - g_t) ** 2)
    return closs, sloss, x2


# ----------------------------------------------------------------------------
if __name__ == "__main__":
    key = jax.random.PRNGKey(0)
    k1, k2, k3, k4, k5 = jax.random.split(key, 5)

    B_STYLE, H, W = 2, 16, 16
    C1, C2 = 8, 8
    CONTENT_WEIGHT, STYLE_WEIGHT = 1.0, 1000.0

    # content image as in the torch module: NHWC, 3 channels, 0..255 range
    content_img = jax.random.uniform(k1, (1, H, W, 3), minval=0.0, maxval=255.0)
    # "input_param" image being optimized, NCHW in [0, 1]
    x = jax.random.uniform(k2, (1, 3, H, W))
    # batch of style images, NCHW in [0, 1]
    targets = jax.random.uniform(k3, (B_STYLE, 3, H, W))

    # deterministic synthetic conv parameters (nn.Conv2d shapes: OIHW + bias)
    params = {
        "w1": 0.1 * jax.random.normal(k4, (C1, 3, 3, 3), dtype=jnp.float32),
        "b1": jnp.linspace(-0.1, 0.1, C1, dtype=jnp.float32),
        "w2": 0.1 * jax.random.normal(k5, (C2, C1, 3, 3), dtype=jnp.float32),
        "b2": jnp.linspace(-0.05, 0.05, C2, dtype=jnp.float32),
    }

    # "compile" step: precompute the ContentLoss target activation
    content_target = compile_content_target(content_img, params)

    # fused forward pass (single no-grid pallas_call over all streams)
    closs, sloss, x_out = style_transfer_forward(
        x, targets, params, content_target, CONTENT_WEIGHT, STYLE_WEIGHT)
    jax.block_until_ready((closs, sloss, x_out))

    # correctness check against the pure-JAX reference
    ref_closs, ref_sloss, ref_x2 = _ref_forward(
        x, targets, params, content_img, CONTENT_WEIGHT, STYLE_WEIGHT)
    np.testing.assert_allclose(np.asarray(closs), np.asarray(ref_closs),
                               rtol=2e-2, atol=1e-6)
    np.testing.assert_allclose(np.asarray(sloss), np.asarray(ref_sloss),
                               rtol=2e-2, atol=1e-4)
    np.testing.assert_allclose(np.asarray(x_out), np.asarray(ref_x2),
                               rtol=2e-2, atol=1e-3)

    print("KERNEL_OK")
</pallas_src>

<mosaic_0001>
module attributes {stable_mosaic.version = 11 : i64} {
  func.func @_conv1_target_kernel(%arg0: memref<8x640xbf16, #tpu.memory_space<vmem>>, %arg1: memref<8x72xbf16, #tpu.memory_space<vmem>>, %arg2: memref<8x1xf32, #tpu.memory_space<vmem>>, %arg3: memref<1x384xf32, #tpu.memory_space<vmem>>, %arg4: memref<8x384xf32, #tpu.memory_space<vmem>>, %arg5: memref<72x384xbf16, #tpu.memory_space<vmem>>) attributes {dimension_semantics = [], scalar_prefetch = 0 : i64, scratch_operands = 1 : i64, tpu.core_type = #tpu.core_type<tc>} {
    %c0 = arith.constant 0 : index
    %c109 = arith.constant 109 : index
    %0 = vector.load %arg0[%c0, %c109] : memref<8x640xbf16, #tpu.memory_space<vmem>>, vector<8x384xbf16>
    %c0_0 = arith.constant 0 : index
    %c0_1 = arith.constant 0 : index
    %1 = vector.load %arg5[%c0_0, %c0_1] : memref<72x384xbf16, #tpu.memory_space<vmem>>, vector<8x384xbf16>
    tpu.vector_store %arg5[%c0_0, %c0_1], %0 {strides = array<i32>} : memref<72x384xbf16, #tpu.memory_space<vmem>>, vector<8x384xbf16>,
    %c0_2 = arith.constant 0 : index
    %c110 = arith.constant 110 : index
    %2 = vector.load %arg0[%c0_2, %c110] : memref<8x640xbf16, #tpu.memory_space<vmem>>, vector<8x384xbf16>
    %c8 = arith.constant 8 : index
    %c0_3 = arith.constant 0 : index
    %3 = vector.load %arg5[%c8, %c0_3] : memref<72x384xbf16, #tpu.memory_space<vmem>>, vector<8x384xbf16>
    tpu.vector_store %arg5[%c8, %c0_3], %2 {strides = array<i32>} : memref<72x384xbf16, #tpu.memory_space<vmem>>, vector<8x384xbf16>,
    %c0_4 = arith.constant 0 : index
    %c111 = arith.constant 111 : index
    %4 = vector.load %arg0[%c0_4, %c111] : memref<8x640xbf16, #tpu.memory_space<vmem>>, vector<8x384xbf16>
    %c16 = arith.constant 16 : index
    %c0_5 = arith.constant 0 : index
    %5 = vector.load %arg5[%c16, %c0_5] : memref<72x384xbf16, #tpu.memory_space<vmem>>, vector<8x384xbf16>
    tpu.vector_store %arg5[%c16, %c0_5], %4 {strides = array<i32>} : memref<72x384xbf16, #tpu.memory_space<vmem>>, vector<8x384xbf16>,
    %c0_6 = arith.constant 0 : index
    %c127 = arith.constant 127 : index
    %6 = vector.load %arg0[%c0_6, %c127] : memref<8x640xbf16, #tpu.memory_space<vmem>>, vector<8x384xbf16>
    %c24 = arith.constant 24 : index
    %c0_7 = arith.constant 0 : index
    %7 = vector.load %arg5[%c24, %c0_7] : memref<72x384xbf16, #tpu.memory_space<vmem>>, vector<8x384xbf16>
    tpu.vector_store %arg5[%c24, %c0_7], %6 {strides = array<i32>} : memref<72x384xbf16, #tpu.memory_space<vmem>>, vector<8x384xbf16>,
    %c0_8 = arith.constant 0 : index
    %c128 = arith.constant 128 : index
    %8 = vector.load %arg0[%c0_8, %c128] : memref<8x640xbf16, #tpu.memory_space<vmem>>, vector<8x384xbf16>
    %c32 = arith.constant 32 : index
    %c0_9 = arith.constant 0 : index
    %9 = vector.load %arg5[%c32, %c0_9] : memref<72x384xbf16, #tpu.memory_space<vmem>>, vector<8x384xbf16>
    tpu.vector_store %arg5[%c32, %c0_9], %8 {strides = array<i32>} : memref<72x384xbf16, #tpu.memory_space<vmem>>, vector<8x384xbf16>,
    %c0_10 = arith.constant 0 : index
    %c129 = arith.constant 129 : index
    %10 = vector.load %arg0[%c0_10, %c129] : memref<8x640xbf16, #tpu.memory_space<vmem>>, vector<8x384xbf16>
    %c40 = arith.constant 40 : index
    %c0_11 = arith.constant 0 : index
    %11 = vector.load %arg5[%c40, %c0_11] : memref<72x384xbf16, #tpu.memory_space<vmem>>, vector<8x384xbf16>
    tpu.vector_store %arg5[%c40, %c0_11], %10 {strides = array<i32>} : memref<72x384xbf16, #tpu.memory_space<vmem>>, vector<8x384xbf16>,
    %c0_12 = arith.constant 0 : index
    %c145 = arith.constant 145 : index
    %12 = vector.load %arg0[%c0_12, %c145] : memref<8x640xbf16, #tpu.memory_space<vmem>>, vector<8x384xbf16>
    %c48 = arith.constant 48 : index
    %c0_13 = arith.constant 0 : index
    %13 = vector.load %arg5[%c48, %c0_13] : memref<72x384xbf16, #tpu.memory_space<vmem>>, vector<8x384xbf16>
    tpu.vector_store %arg5[%c48, %c0_13], %12 {strides = array<i32>} : memref<72x384xbf16, #tpu.memory_space<vmem>>, vector<8x384xbf16>,
    %c0_14 = arith.constant 0 : index
    %c146 = arith.constant 146 : index
    %14 = vector.load %arg0[%c0_14, %c146] : memref<8x640xbf16, #tpu.memory_space<vmem>>, vector<8x384xbf16>
    %c56 = arith.constant 56 : index
    %c0_15 = arith.constant 0 : index
    %15 = vector.load %arg5[%c56, %c0_15] : memref<72x384xbf16, #tpu.memory_space<vmem>>, vector<8x384xbf16>
    tpu.vector_store %arg5[%c56, %c0_15], %14 {strides = array<i32>} : memref<72x384xbf16, #tpu.memory_space<vmem>>, vector<8x384xbf16>,
    %c0_16 = arith.constant 0 : index
    %c147 = arith.constant 147 : index
    %16 = vector.load %arg0[%c0_16, %c147] : memref<8x640xbf16, #tpu.memory_space<vmem>>, vector<8x384xbf16>
    %c64 = arith.constant 64 : index
    %c0_17 = arith.constant 0 : index
    %17 = vector.load %arg5[%c64, %c0_17] : memref<72x384xbf16, #tpu.memory_space<vmem>>, vector<8x384xbf16>
    tpu.vector_store %arg5[%c64, %c0_17], %16 {strides = array<i32>} : memref<72x384xbf16, #tpu.memory_space<vmem>>, vector<8x384xbf16>,
    %c0_18 = arith.constant 0 : index
    %c0_19 = arith.constant 0 : index
    %18 = vector.load %arg1[%c0_18, %c0_19] : memref<8x72xbf16, #tpu.memory_space<vmem>>, vector<8x72xbf16>
    %c0_20 = arith.constant 0 : index
    %c0_21 = arith.constant 0 : index
    %19 = vector.load %arg5[%c0_20, %c0_21] : memref<72x384xbf16, #tpu.memory_space<vmem>>, vector<72x384xbf16>
    %cst = arith.constant dense<0.000000e+00> : vector<8x384xf32>
    %20 = tpu.matmul %18, %19, %cst {dimension_numbers = #tpu.dot_dimension_numbers<[1], [0], [0], [1], [0, 0, 1, 1], [], []>} : vector<8x72xbf16>, vector<72x384xbf16>, vector<8x384xf32> -> vector<8x384xf32>
    %c0_22 = arith.constant 0 : index
    %c0_23 = arith.constant 0 : index
    %21 = vector.load %arg2[%c0_22, %c0_23] : memref<8x1xf32, #tpu.memory_space<vmem>>, vector<8x1xf32>
    %22 = vector.broadcast %21 : vector<8x1xf32> to vector<8x384xf32>
    %23 = arith.addf %20, %22 : vector<8x384xf32>
    %c0_24 = arith.constant 0 : index
    %c0_25 = arith.constant 0 : index
    %24 = vector.load %arg3[%c0_24, %c0_25] : memref<1x384xf32, #tpu.memory_space<vmem>>, vector<1x384xf32>
    %25 = vector.broadcast %24 : vector<1x384xf32> to vector<8x384xf32>
    %26 = arith.mulf %23, %25 : vector<8x384xf32>
    %c0_26 = arith.constant 0 : index
    %c0_27 = arith.constant 0 : index
    %27 = vector.load %arg4[%c0_26, %c0_27] : memref<8x384xf32, #tpu.memory_space<vmem>>, vector<8x384xf32>
    tpu.vector_store %arg4[%c0_26, %c0_27], %26 {strides = array<i32>} : memref<8x384xf32, #tpu.memory_space<vmem>>, vector<8x384xf32>,
    return
  }
}

</mosaic_0001>

<llo_original>
// kernel: tpu_custom_call.1
$region0: #{tpu_custom_call.1}
  #allocation0 [shape = 'u32[]', space=smem, size = 0x4, offset = 0x4, fixed_abs, tag = 'smem constant byte address 0x4 - core index']
  #allocation1 [shape = 'u32[144,128]{1,0:T(1,128)}', space=vmem, size = 0x12000, scoped, tag = 'internal scratch']
  #allocation2 [shape = 'bf16[72,384]{1,0:T(8,128)(2,1)}', space=vmem, size = 0xd800, scoped, tag = 'scratch operand']
  %s0 = inlined_call_operand.hbm [shape: bf16[8,640], index: 0, kind: input, shape index: {}]
  %s1 = inlined_call_operand.vmem [shape: bf16[8,72], index: 1, kind: input, shape index: {}]
  %s2 = inlined_call_operand.vmem [shape: f32[8,1], index: 2, kind: input, shape index: {}]
  %s3 = inlined_call_operand.vmem [shape: f32[1,384], index: 3, kind: input, shape index: {}]
  %s4 = inlined_call_operand.hbm [shape: f32[8,384], index: 4, kind: output, shape index: {}]
  %s5 = sld [smem:[#allocation0]]
  $region30: #{tpu_custom_call.1} parent=0
    _
  %s7 = ssub.s32 1, %s5
  %s8 = scalar_select 0, %s7, %s5
  $region1: #{tpu_custom_call.1} parent=0
    #allocation3 [shape = 'u8[10240]{0}', space=vmem, size = 0x2800, scoped, tag = 'input window, operand 0, single buffered']
    #allocation4 [shape = 's32[1]{0}', space=sflag, size = 0x4, scoped, tag = 'scoped memory for tpu_custom_call.1']
    #allocation5 [shape = 's32[1]{0}', space=sflag, size = 0x4, scoped, tag = 'scoped memory for tpu_custom_call.1']
    #allocation6 [shape = 'u8[12288]{0}', space=vmem, size = 0x3000, scoped, tag = 'output window, operand 0, single buffered']
    %9 = vsyncpa [#allocation4], 0
    %10 = vsyncpa [#allocation5], 0
    // Predicated region
    $region2: #{tpu_custom_call.1} parent=1 // pred_check
      _
    $region3: #{tpu_custom_call.1} parent=1 // pred_check_branch
      %12 = sbr.rel (0) target = $region5
    $region4: #{tpu_custom_call.1} parent=1 // pred_region
      %s14 = ssub.s32 320, 320
      %15 = vsyncadd [#allocation4], %s14
      %s17 = sshll.u32 [#allocation3], 4
      %s18 = int_to_ptr.vmem [resolvable:$true] %s17
      %20 = dma.hbm_to_vmem [thread:$0]  %s0, 320, %s18, [#allocation4]
    $region5: #{tpu_custom_call.1} parent=1 // pred_fallthru
      _
    // Predicated region
    $region6: #{tpu_custom_call.1} parent=1 // pred_check
      _
    $region7: #{tpu_custom_call.1} parent=1 // pred_check_branch
      %22 = sbr.rel (0) target = $region9
    $region8: #{tpu_custom_call.1} parent=1 // pred_region
      _
    $region9: #{tpu_custom_call.1} parent=1 // pred_fallthru
      _
    // Predicated region
    $region10: #{tpu_custom_call.1} parent=1 // pred_check
      _
    $region11: #{tpu_custom_call.1} parent=1 // pred_check_branch
      %24 = sbr.rel (0) target = $region13
    $region12: #{tpu_custom_call.1} parent=1 // pred_region
      _
    $region13: #{tpu_custom_call.1} parent=1 // pred_fallthru
      _
    // Predicated region
    $region14: #{tpu_custom_call.1} parent=1 // pred_check
      _
    $region15: #{tpu_custom_call.1} parent=1 // pred_check_branch
      %26 = sbr.rel (0) target = $region17
    $region16: #{tpu_custom_call.1} parent=1 // pred_region
      _
    $region17: #{tpu_custom_call.1} parent=1 // pred_fallthru
      _
    // Predicated region
    $region18: #{tpu_custom_call.1} parent=1 // pred_check
      _
    $region19: #{tpu_custom_call.1} parent=1 // pred_check_branch
      %28 = sbr.rel (0) target = $region21
    $region20: #{tpu_custom_call.1} parent=1 // pred_region
      %29 = dma.done [#allocation4], 320
    $region21: #{tpu_custom_call.1} parent=1 // pred_fallthru
      _
    %v31 = vld [vmem:[#allocation3] sm:$0xff]
    %v32 = vld [vmem:[#allocation3 + $0x8] sm:$0xff]
    %35 = vrot.lane.b32.xlu0 %v31, 19
    %v36 = vpop.permute.xlu0 %35
    %37 = vrot.lane.b32.xlu0 %v32, 19
    %v38 = vpop.permute.xlu0 %37
    %v39 = vrot.slane %v36, 4
    %v40 = vrot.slane %v38, 4
    %vm41 = vcmask 1043456
    %v42 = vsel %vm41, %v39, %v40
    %vm43 = vcmask 154624
    %v44 = vsel %vm43, %v36, %v42
    %v45 = vsel %vm43, %v38, %v40
    %48 = vst [vmem:[#allocation2] sm:$0xff] %v44
    %49 = vst [vmem:[#allocation2 + $0x8] sm:$0xf] %v45
    %v50 = vld [vmem:[#allocation3] sm:$0xff]
    %v51 = vld [vmem:[#allocation3 + $0x8] sm:$0xff]
    %54 = vrot.lane.b32.xlu0 %v50, 18
    %v55 = vpop.permute.xlu0 %54
    %56 = vrot.lane.b32.xlu0 %v51, 18
    %v57 = vpop.permute.xlu0 %56
    %v58 = vrot.slane %v55, 4
    %v59 = vrot.slane %v57, 4
    %v60 = vsel %vm41, %v58, %v59
    %vm61 = vcmask 146432
    %v62 = vsel %vm61, %v55, %v60
    %v63 = vsel %vm61, %v57, %v59
    %66 = vst [vmem:[#allocation2 + $0xc] sm:$0xff] %v62
    %67 = vst [vmem:[#allocation2 + $0x14] sm:$0xf] %v63
    %v68 = vld [vmem:[#allocation3] sm:$0xff]
    %v69 = vld [vmem:[#allocation3 + $0x8] sm:$0xff]
    %72 = vrot.lane.b32.xlu0 %v68, 17
    %v73 = vpop.permute.xlu0 %72
    %74 = vrot.lane.b32.xlu0 %v69, 17
    %v75 = vpop.permute.xlu0 %74
    %v76 = vrot.slane %v73, 4
    %v77 = vrot.slane %v75, 4
    %v78 = vsel %vm41, %v76, %v77
    %vm79 = vcmask 138240
    %v80 = vsel %vm79, %v73, %v78
    %v81 = vsel %vm79, %v75, %v77
    %84 = vst [vmem:[#allocation2 + $0x18] sm:$0xff] %v80
    %85 = vst [vmem:[#allocation2 + $0x20] sm:$0xf] %v81
    %v86 = vld [vmem:[#allocation3] sm:$0xff]
    %v87 = vld [vmem:[#allocation3 + $0x8] sm:$0xff]
    %90 = vrot.lane.b32.xlu0 %v86, 1
    %v91 = vpop.permute.xlu0 %90
    %92 = vrot.lane.b32.xlu0 %v87, 1
    %v93 = vpop.permute.xlu0 %92
    %v94 = vrot.slane %v91, 4
    %v95 = vrot.slane %v93, 4
    %v96 = vsel %vm41, %v94, %v95
    %vm97 = vcmask 7168
    %v98 = vsel %vm97, %v91, %v96
    %v99 = vsel %vm97, %v93, %v95
    %102 = vst [vmem:[#allocation2 + $0x24] sm:$0xff] %v98
    %103 = vst [vmem:[#allocation2 + $0x2c] sm:$0xf] %v99
    %v104 = vld [vmem:[#allocation3 + $0x4] sm:$0xff]
    %v105 = vld [vmem:[#allocation3 + $0xc] sm:$0xf]
    %106 = vst [vmem:[#allocation2 + $0x30] sm:$0xff] %v104
    %107 = vst [vmem:[#allocation2 + $0x38] sm:$0xf] %v105
    %v108 = vld [vmem:[#allocation3 + $0x4] sm:$0xff]
    %v109 = vld [vmem:[#allocation3 + $0xc] sm:$0xff]
    %112 = vrot.lane.b32.xlu0 %v108, 127
    %v113 = vpop.permute.xlu0 %112
    %114 = vrot.lane.b32.xlu0 %v109, 127
    %v115 = vpop.permute.xlu0 %114
    %v116 = vrot.slane %v113, 4
    %v117 = vrot.slane %v115, 4
    %v118 = vsel %vm41, %v116, %v117
    %vm119 = vcmask 1039360
    %v120 = vsel %vm119, %v113, %v118
    %v121 = vsel %vm119, %v115, %v117
    %124 = vst [vmem:[#allocation2 + $0x3c] sm:$0xff] %v120
    %125 = vst [vmem:[#allocation2 + $0x44] sm:$0xf] %v121
    %v126 = vld [vmem:[#allocation3 + $0x4] sm:$0xff]
    %v127 = vld [vmem:[#allocation3 + $0xc] sm:$0xff]
    %130 = vrot.lane.b32.xlu0 %v126, 111
    %v131 = vpop.permute.xlu0 %130
    %132 = vrot.lane.b32.xlu0 %v127, 111
    %v133 = vpop.permute.xlu0 %132
    %v134 = vrot.slane %v131, 4
    %v135 = vrot.slane %v133, 4
    %v136 = vsel %vm41, %v134, %v135
    %vm137 = vcmask 908288
    %v138 = vsel %vm137, %v131, %v136
    %v139 = vsel %vm137, %v133, %v135
    %142 = vst [vmem:[#allocation2 + $0x48] sm:$0xff] %v138
    %143 = vst [vmem:[#allocation2 + $0x50] sm:$0xf] %v139
    %v144 = vld [vmem:[#allocation3 + $0x4] sm:$0xff]
    %v145 = vld [vmem:[#allocation3 + $0xc] sm:$0xff]
    %148 = vrot.lane.b32.xlu0 %v144, 110
    %v149 = vpop.permute.xlu0 %148
    %150 = vrot.lane.b32.xlu0 %v145, 110
    %v151 = vpop.permute.xlu0 %150
    %v152 = vrot.slane %v149, 4
    %v153 = vrot.slane %v151, 4
    %v154 = vsel %vm41, %v152, %v153
    %vm155 = vcmask 900096
    %v156 = vsel %vm155, %v149, %v154
    %v157 = vsel %vm155, %v151, %v153
    %160 = vst [vmem:[#allocation2 + $0x54] sm:$0xff] %v156
    %161 = vst [vmem:[#allocation2 + $0x5c] sm:$0xf] %v157
    %v162 = vld [vmem:[#allocation3 + $0x4] sm:$0xff]
    %v163 = vld [vmem:[#allocation3 + $0xc] sm:$0xff]
    %166 = vrot.lane.b32.xlu0 %v162, 109
    %v167 = vpop.permute.xlu0 %166
    %168 = vrot.lane.b32.xlu0 %v163, 109
    %v169 = vpop.permute.xlu0 %168
    %v170 = vrot.slane %v167, 4
    %v171 = vrot.slane %v169, 4
    %v172 = vsel %vm41, %v170, %v171
    %vm173 = vcmask 891904
    %v174 = vsel %vm173, %v167, %v172
    %v175 = vsel %vm173, %v169, %v171
    %178 = vst [vmem:[#allocation2 + $0x60] sm:$0xff] %v174
    %179 = vst [vmem:[#allocation2 + $0x68] sm:$0xf] %v175
    %v180 = vld [vmem:[%s1] sm:$0xf]
    %v181 = vld [vmem:[#allocation2] sm:$0xff]
    %v182 = vld [vmem:[#allocation2 + $0x8] sm:$0xf]
    %v183 = vld [vmem:[#allocation2 + $0xc] sm:$0xff]
    %v184 = vld [vmem:[#allocation2 + $0x14] sm:$0xf]
    %v185 = vld [vmem:[#allocation2 + $0x18] sm:$0xff]
    %v186 = vld [vmem:[#allocation2 + $0x20] sm:$0xf]
    %v187 = vld [vmem:[#allocation2 + $0x24] sm:$0xff]
    %v188 = vld [vmem:[#allocation2 + $0x2c] sm:$0xf]
    %v189 = vld [vmem:[#allocation2 + $0x30] sm:$0xff]
    %v190 = vld [vmem:[#allocation2 + $0x38] sm:$0xf]
    %v191 = vld [vmem:[#allocation2 + $0x3c] sm:$0xff]
    %v192 = vld [vmem:[#allocation2 + $0x44] sm:$0xf]
    %v193 = vld [vmem:[#allocation2 + $0x48] sm:$0xff]
    %v194 = vld [vmem:[#allocation2 + $0x50] sm:$0xf]
    %v195 = vld [vmem:[#allocation2 + $0x54] sm:$0xff]
    %v196 = vld [vmem:[#allocation2 + $0x5c] sm:$0xf]
    %v197 = vld [vmem:[#allocation2 + $0x60] sm:$0xff]
    %v198 = vld [vmem:[#allocation2 + $0x68] sm:$0xf]
    %v199 = vld [vmem:[%s2] sm:$0xff]
    %201 = vset.pattern.permute.xlu0 0
    %202 = vperm.xlu0 %201, %v199
    %v203 = vpop.permute.xlu0 %202
    %v223 = vunpack.c.l.b16 %v181
    %v224 = vunpack.c.h.b16 %v181
    %v225 = vunpack.c.l.b16 %v182
    %v226 = vunpack.c.l.b16 %v183
    %v227 = vunpack.c.h.b16 %v183
    %v228 = vunpack.c.l.b16 %v184
    %v229 = vunpack.c.l.b16 %v185
    %v230 = vunpack.c.h.b16 %v185
    %v231 = vunpack.c.l.b16 %v186
    %v232 = vunpack.c.l.b16 %v187
    %v233 = vunpack.c.h.b16 %v187
    %v234 = vunpack.c.l.b16 %v188
    %v235 = vunpack.c.l.b16 %v189
    %v236 = vunpack.c.h.b16 %v189
    %v237 = vunpack.c.l.b16 %v190
    %v238 = vunpack.c.l.b16 %v191
    %v239 = vunpack.c.h.b16 %v191
    %v240 = vunpack.c.l.b16 %v192
    %v241 = vunpack.c.l.b16 %v193
    %v242 = vunpack.c.h.b16 %v193
    %v243 = vunpack.c.l.b16 %v194
    %v244 = vunpack.c.l.b16 %v195
    %v245 = vunpack.c.h.b16 %v195
    %v246 = vunpack.c.l.b16 %v196
    %v247 = vunpack.c.l.b16 %v197
    %v248 = vunpack.c.h.b16 %v197
    %v249 = vunpack.c.l.b16 %v198
    %v250 = vpack.c.b16 %v226, %v223
    %v251 = vpack.c.b16 %v227, %v224
    %v252 = vpack.c.b16 %v228, %v225
    %v253 = vpack.c.b16 %v232, %v229
    %v254 = vpack.c.b16 %v233, %v230
    %v255 = vpack.c.b16 %v234, %v231
    %v256 = vpack.c.b16 %v238, %v235
    %v257 = vpack.c.b16 %v239, %v236
    %v258 = vpack.c.b16 %v240, %v237
    %v259 = vpack.c.b16 %v244, %v241
    %v260 = vpack.c.b16 %v245, %v242
    %v261 = vpack.c.b16 %v246, %v243
    %v262 = vpack.c.b16 %v247, %v247
    %v263 = vpack.c.b16 %v248, %v248
    %v264 = vpack.c.b16 %v249, %v249
    %vm277 = vcmask 588800
    %v279 = vsel %vm277, %v180, 0
    %vm281 = vcmask 1043456
    %v283 = vsel %vm281, %v262, 0
    %v286 = vsel %vm281, %v263, 0
    %v289 = vsel %vm281, %v264, 0
    %291 = vmatprep.subr.bf16.mxu0 0
    %292 = vmatpush1.bf16.msra.mxu0 0
    %293 = vmatprep.subr.bf16.mxu0 0
    %294 = vmatpush1.bf16.msra.mxu0 0
    %295 = vmatprep.subr.bf16.mxu0 0
    %296 = vmatpush1.bf16.msra.mxu0 0
    %297 = vmatprep.subr.bf16.mxu0 %v286
    %298 = vmatpush1.bf16.msra.mxu0 %v283
    %299 = vmatprep.subr.bf16.mxu0 %v260
    %300 = vmatpush1.bf16.msra.mxu0 %v259
    %301 = vmatprep.subr.bf16.mxu0 %v257
    %302 = vmatpush1.bf16.msra.mxu0 %v256
    %303 = vmatprep.subr.bf16.mxu0 %v254
    %304 = vmatpush1.bf16.msra.mxu0 %v253
    %305 = vmatprep.subr.bf16.mxu0 %v251
    %306 = vmatpush1.bf16.msra.mxu0 %v250
    %307 = vmatprep.subr.bf16.mxu0 0
    %308 = vmatpush2.bf16.msra.mxu0 0
    %309 = vmatprep.subr.bf16.mxu0 0
    %310 = vmatpush2.bf16.msra.mxu0 0
    %311 = vmatprep.subr.bf16.mxu0 0
    %312 = vmatpush2.bf16.msra.mxu0 0
    %313 = vmatprep.subr.bf16.mxu0 0
    %314 = vmatpush2.bf16.msra.mxu0 0
    %315 = vmatprep.subr.bf16.mxu0 0
    %316 = vmatpush2.bf16.msra.mxu0 0
    %317 = vmatprep.subr.bf16.mxu0 0
    %318 = vmatpush2.bf16.msra.mxu0 0
    %319 = vmatprep.subr.bf16.mxu0 0
    %320 = vmatpush2.bf16.msra.mxu0 0
    %321 = vmatprep.subr.bf16.mxu0 0
    %322 = vmatpush2.bf16.msra.mxu0 0
    %323 = vmatprep.mubr.bf16.mxu0 0
    %324 = vmatmul.mubr.bf16.gmra.mxu0 %v279
    %v325 = vpop.f32.mrf.mxu0
    %v326 = vadd.f32 %v203, %v325
    %v327 = vpop.f32.mrf.mxu0
    %v328 = vadd.f32 %v203, %v327
    %v329 = vpop.f32.mrf.mxu0
    %v330 = vpop.f32.mrf.mxu0
    %331 = vdwg.mxu0
    %332 = vmatprep.subr.bf16.mxu0 0
    %333 = vmatpush1.bf16.msra.mxu0 0
    %334 = vmatprep.subr.bf16.mxu0 0
    %335 = vmatpush1.bf16.msra.mxu0 0
    %336 = vmatprep.subr.bf16.mxu0 0
    %337 = vmatpush1.bf16.msra.mxu0 0
    %338 = vmatprep.subr.bf16.mxu0 0
    %339 = vmatpush1.bf16.msra.mxu0 %v289
    %340 = vmatprep.subr.bf16.mxu0 0
    %341 = vmatpush1.bf16.msra.mxu0 %v261
    %342 = vmatprep.subr.bf16.mxu0 0
    %343 = vmatpush1.bf16.msra.mxu0 %v258
    %344 = vmatprep.subr.bf16.mxu0 0
    %345 = vmatpush1.bf16.msra.mxu0 %v255
    %346 = vmatprep.subr.bf16.mxu0 0
    %347 = vmatpush1.bf16.msra.mxu0 %v252
    %348 = vmatprep.subr.bf16.mxu0 0
    %349 = vmatpush2.bf16.msra.mxu0 0
    %350 = vmatprep.subr.bf16.mxu0 0
    %351 = vmatpush2.bf16.msra.mxu0 0
    %352 = vmatprep.subr.bf16.mxu0 0
    %353 = vmatpush2.bf16.msra.mxu0 0
    %354 = vmatprep.subr.bf16.mxu0 0
    %355 = vmatpush2.bf16.msra.mxu0 0
    %356 = vmatprep.subr.bf16.mxu0 0
    %357 = vmatpush2.bf16.msra.mxu0 0
    %358 = vmatprep.subr.bf16.mxu0 0
    %359 = vmatpush2.bf16.msra.mxu0 0
    %360 = vmatprep.subr.bf16.mxu0 0
    %361 = vmatpush2.bf16.msra.mxu0 0
    %362 = vmatprep.subr.bf16.mxu0 0
    %363 = vmatpush2.bf16.msra.mxu0 0
    %364 = vmatprep.mubr.bf16.mxu0 0
    %365 = vmatmul.mubr.bf16.gmra.mxu0 %v279
    %v366 = vpop.f32.mrf.mxu0
    %v367 = vadd.f32 %v203, %v366
    %v368 = vpop.f32.mrf.mxu0
    %v369 = vpop.f32.mrf.mxu0
    %v370 = vpop.f32.mrf.mxu0
    %371 = vdwg.mxu0
    %v372 = vld [vmem:[%s3] sm:$0x7]
    %v374 = vlaneseq
    %v375 = vshrl.u32 %v374, 7
    %v376 = vsub.s32 0, %v375
    %v377 = vrot.slane %v372, %v376
    %v378 = vlaneseq
    %v379 = vshrl.u32 %v378, 7
    %v380 = vsub.s32 1, %v379
    %v381 = vrot.slane %v372, %v380
    %v382 = vlaneseq
    %v383 = vshrl.u32 %v382, 7
    %v384 = vsub.s32 2, %v383
    %v385 = vrot.slane %v372, %v384
    %v389 = vmul.f32 %v326, %v377
    %v390 = vmul.f32 %v328, %v381
    %v391 = vmul.f32 %v367, %v385
    %392 = vst [vmem:[#allocation6] sm:$0xff] %v389
    %393 = vst [vmem:[#allocation6 + $0x8] sm:$0xff] %v390
    %394 = vst [vmem:[#allocation6 + $0x10] sm:$0xff] %v391
    // Predicated region
    $region22: #{tpu_custom_call.1} parent=1 // pred_check
      _
    $region23: #{tpu_custom_call.1} parent=1 // pred_check_branch
      %396 = sbr.rel (0) target = $region25
    $region24: #{tpu_custom_call.1} parent=1 // pred_region
      %s398 = ssub.s32 384, 384
      %399 = vsyncadd [#allocation5], %s398
      %s401 = sshll.u32 [#allocation6], 4
      %s402 = int_to_ptr.vmem [resolvable:$true] %s401
      %404 = dma.vmem_to_hbm [thread:$0]  %s402, 384, %s4, [#allocation5]
    $region25: #{tpu_custom_call.1} parent=1 // pred_fallthru
      _
    // Predicated region
    $region26: #{tpu_custom_call.1} parent=1 // pred_check
      _
    $region27: #{tpu_custom_call.1} parent=1 // pred_check_branch
      %406 = sbr.rel (0) target = $region29
    $region28: #{tpu_custom_call.1} parent=1 // pred_region
      %407 = dma.done [#allocation5], 384
    $region29: #{tpu_custom_call.1} parent=1 // pred_fallthru
      _
    %408 = vsyncpa [#allocation4], 1
    %409 = vsyncpa [#allocation5], 1

</llo_original>
